<compile_context>
chip_gen: v5e
topology: v5e:2x2
jax: 0.10.0
libtpu: 0.0.40
codegen_flags: <defaults>
</compile_context>

<pallas_src>
import jax
import jax.numpy as jnp
from jax.experimental import pallas as pl
from jax.experimental.pallas import tpu as pltpu


def _spatial_attention_kernel(a_ref, x_ref, o_ref):
    """One block of TN batch elements, everything lane-dense over H*W.

    a_ref: (2*HW, HW) bf16 VMEM — fused conv operator for [avg ; max].
    x_ref: (TN, C, HW) VMEM     — input block (native dtype).
    o_ref: (TN, C, HW) VMEM     — output block (native dtype).
    """
    x = x_ref[...]
    xf = x.astype(jnp.float32)

    # Fused channel reductions over the single resident copy of the block.
    avg = jnp.mean(xf, axis=1)                        # (TN, HW) f32
    mx = jnp.max(xf, axis=1)                          # (TN, HW) f32

    # 7x7 same-padded conv as ONE MXU matmul against the precomputed operator
    # (bf16 operands — native MXU rate on all generations — f32 accumulate).
    ops = jnp.concatenate(
        [avg.astype(a_ref.dtype), mx.astype(a_ref.dtype)], axis=-1)  # (TN, 2*HW)
    conv = jnp.dot(ops, a_ref[...], preferred_element_type=jnp.float32)

    attn = jax.nn.sigmoid(conv)                       # (TN, HW) f32
    # Rescale against the native input dtype (keeps f32 only for conv path).
    o_ref[...] = x * attn[:, None, :].astype(x.dtype)


def _build_conv_operator(conv_weight, H, W, dtype=jnp.bfloat16):
    """Build A of shape (2*H*W, H*W) with
        A[c*HW + p, o] = weight[0, c, ih-oh+P, iw-ow+P]
    where p = ih*W + iw (input pixel), o = oh*W + ow (output pixel), and 0
    outside the KxK window — exactly PyTorch's zero-padded 'same'
    cross-correlation, fused over the two [avg, max] input channels."""
    K = conv_weight.shape[-1]
    P = K // 2
    w2 = conv_weight.reshape(2, K, K).astype(jnp.float32)          # (2, K, K)
    dh = jnp.arange(H)[:, None] - jnp.arange(H)[None, :] + P       # (H, H)
    dw = jnp.arange(W)[:, None] - jnp.arange(W)[None, :] + P       # (W, W)
    vh = (dh >= 0) & (dh < K)
    vw = (dw >= 0) & (dw < K)
    dh_c = jnp.clip(dh, 0, K - 1)
    dw_c = jnp.clip(dw, 0, K - 1)
    # a5 dims: [c, ih, oh, iw, ow]
    a5 = w2[:, dh_c[:, :, None, None], dw_c[None, None, :, :]]     # (2,H,H,W,W)
    mask = vh[:, :, None, None] & vw[None, None, :, :]             # (H,H,W,W)
    a5 = jnp.where(mask[None], a5, 0.0)
    # -> [c, ih, iw, oh, ow] -> (2, H*W, H*W) -> fused (2*H*W, H*W)
    a = a5.transpose(0, 1, 3, 2, 4).reshape(2, H * W, H * W)
    return a.reshape(2 * H * W, H * W).astype(dtype)


def _usable_vmem_bytes():
    """Per-core VMEM budget with ~20% headroom for compiler scratch/sems.
    v5e/v6e report 128 MiB; v7x reports 64 MiB; fall back to the smallest."""
    cap = 64 << 20
    try:
        info = pltpu.get_tpu_info()
        cap = int(getattr(info, "vmem_capacity_bytes", cap))
    except Exception:
        pass
    return int(cap * 0.80)


def _round_up(v, m):
    return -(-v // m) * m


def _pick_batch_tile(N, per_batch_bytes, budget_bytes, min_steps=4):
    """Largest tn whose streamed-block VMEM cost fits `budget_bytes` while
    keeping at least min(N, min_steps) grid steps (double-buffer overlap and
    megacore sharding on v7x)."""
    cap = max(1, budget_bytes // max(1, per_batch_bytes))
    cap = min(cap, N)
    steps_needed = min(N, min_steps)
    for cand in range(cap, 0, -1):
        if -(-N // cand) >= steps_needed:
            return cand
    return 1


def spatial_attention(x, conv_weight, *, kernel_size=7):
    """x: (N, C, H, W); conv_weight: (1, 2, K, K) (no bias)."""
    N, C, H, W = x.shape
    K = kernel_size
    assert conv_weight.shape == (1, 2, K, K)
    HW = H * W

    a_mat = _build_conv_operator(conv_weight, H, W)        # (2*HW, HW) bf16

    # Lane-dense view: fold H*W into the lane dim (free row-major reshape).
    x_flat = x.reshape(N, C, HW)
    itemsize = jnp.dtype(x.dtype).itemsize

    usable = _usable_vmem_bytes()
    op_bytes = int(a_mat.size) * jnp.dtype(a_mat.dtype).itemsize  # single-buffered

    # Conservative per-batch VMEM cost: in/out blocks double-buffered with the
    # (C, HW) slab padded to the sublane granule, plus the f32 upcast temp and
    # the small 2-D f32 temps (avg / max / concat / conv / attn).
    granule = max(8, 32 // itemsize)
    c_pad_x = _round_up(C, granule)
    c_pad_f32 = _round_up(C, 8)
    per_batch = (4 * c_pad_x * HW * itemsize        # input + output, x2 buffers
                 + c_pad_f32 * HW * 4               # f32 upcast temp
                 + 6 * HW * 4)                      # 2-D f32 temps

    # Use at most ~60% of the remaining VMEM budget for the streamed blocks.
    block_budget = max(per_batch, (usable - op_bytes) * 6 // 10)
    tn = _pick_batch_tile(N, per_batch, block_budget, min_steps=4)

    # tn need not divide N: pad the batch (zero rows are harmless and sliced
    # off), avoiding degenerate tn=1 tiling for odd/prime N.
    n_pad = _round_up(N, tn)
    if n_pad != N:
        x_flat = jnp.pad(x_flat, ((0, n_pad - N), (0, 0), (0, 0)))
    grid = (n_pad // tn,)

    need = op_bytes + tn * per_batch
    # >= 32 MiB lifts v5e's 16 MiB scoped default; capped at the per-core
    # budget (~51 MiB on v7x, ~102 MiB on v5e/v6e) so we never request all of
    # physical VMEM.
    vmem_limit = int(min(usable, max(32 << 20, (need * 5) // 4)))

    out_flat = pl.pallas_call(
        _spatial_attention_kernel,
        out_shape=jax.ShapeDtypeStruct((n_pad, C, HW), x.dtype),
        grid_spec=pltpu.PrefetchScalarGridSpec(
            num_scalar_prefetch=0,
            grid=grid,
            in_specs=[
                # Constant conv operator: same block every step; single buffer.
                pl.BlockSpec((2 * HW, HW), lambda n: (0, 0),
                             pipeline_mode=pl.Buffered(1)),
                pl.BlockSpec((tn, C, HW), lambda n: (n, 0, 0)),
            ],
            out_specs=pl.BlockSpec((tn, C, HW), lambda n: (n, 0, 0)),
        ),
        compiler_params=pltpu.CompilerParams(
            dimension_semantics=("parallel",),
            vmem_limit_bytes=vmem_limit,
        ),
    )(a_mat, x_flat)

    if n_pad != N:
        out_flat = out_flat[:N]
    return out_flat.reshape(N, C, H, W)


def spatial_attention_ref(x, conv_weight):
    """Pure-JAX reference matching the PyTorch forward (f32 conv)."""
    avg = jnp.mean(x, axis=1, keepdims=True)
    mx = jnp.max(x, axis=1, keepdims=True)
    out = jnp.concatenate([avg, mx], axis=1)
    K = conv_weight.shape[-1]
    P = K // 2
    conv = jax.lax.conv_general_dilated(
        out, conv_weight.astype(jnp.float32), window_strides=(1, 1),
        padding=[(P, P), (P, P)],
        dimension_numbers=("NCHW", "OIHW", "NCHW"))
    return x * jax.nn.sigmoid(conv)


if __name__ == "__main__":
    key = jax.random.PRNGKey(0)
    kx, kw = jax.random.split(key)

    N, C, H, W = 2, 4, 16, 16
    K = 7

    x = jax.random.normal(kx, (N, C, H, W), dtype=jnp.float32)
    # Deterministic conv weight, shape (out=1, in=2, K, K), no bias.
    fan_in = 2 * K * K
    conv_weight = (jax.random.uniform(kw, (1, 2, K, K), dtype=jnp.float32,
                                      minval=-1.0, maxval=1.0)
                   / jnp.sqrt(jnp.float32(fan_in)))

    out = spatial_attention(x, conv_weight, kernel_size=K)
    out = jax.block_until_ready(out)

    ref = spatial_attention_ref(x, conv_weight)
    assert out.shape == ref.shape and out.dtype == ref.dtype
    err = float(jnp.max(jnp.abs(out - ref)))
    # Tolerance relaxed relative to pure-f32: the conv matmul uses a bf16
    # operator/operands (f32 accumulation), per the TPU MXU recommendation.
    assert jnp.allclose(out, ref, atol=5e-2, rtol=5e-2), err

    print("KERNEL_OK")
</pallas_src>

<mosaic_0001>
module attributes {stable_mosaic.version = 11 : i64} {
  func.func @_spatial_attention_kernel(%arg0: i32, %arg1: memref<512x256xbf16, #tpu.memory_space<vmem>>, %arg2: memref<1x4x256xf32, #tpu.memory_space<vmem>>, %arg3: memref<1x4x256xf32, #tpu.memory_space<vmem>>) attributes {dimension_semantics = [#tpu.dimension_semantics<parallel>], iteration_bounds = array<i64: 2>, scalar_prefetch = 0 : i64, scratch_operands = 0 : i64, tpu.core_type = #tpu.core_type<tc>, window_params = [{pipeline_mode = #tpu.pipeline_mode<synchronous>, transform_indices = @transform_0, window_bounds = array<i64: 512, 256>}, {transform_indices = @transform_1, window_bounds = array<i64: 1, 4, 256>}, {transform_indices = @transform_2, window_bounds = array<i64: 1, 4, 256>}]} {
    %c0 = arith.constant 0 : index
    %c0_0 = arith.constant 0 : index
    %c0_1 = arith.constant 0 : index
    %0 = vector.load %arg2[%c0, %c0_0, %c0_1] : memref<1x4x256xf32, #tpu.memory_space<vmem>>, vector<1x4x256xf32>
    %cst = arith.constant dense<0.000000e+00> : vector<1x256xf32>
    %1 = vector.multi_reduction <add>, %0, %cst [1] : vector<1x4x256xf32> to vector<1x256xf32>
    %cst_2 = arith.constant 4.000000e+00 : f32
    %2 = vector.broadcast %cst_2 : f32 to vector<1x256xf32>
    %3 = arith.divf %1, %2 : vector<1x256xf32>
    %cst_3 = arith.constant dense<0xFF800000> : vector<1x256xf32>
    %4 = vector.multi_reduction <maximumf>, %0, %cst_3 [1] : vector<1x4x256xf32> to vector<1x256xf32>
    %5 = arith.truncf %3 : vector<1x256xf32> to vector<1x256xbf16>
    %6 = arith.truncf %4 : vector<1x256xf32> to vector<1x256xbf16>
    %7 = tpu.concatenate %5, %6 in 1 : vector<1x256xbf16>, vector<1x256xbf16> -> vector<1x512xbf16>
    %c0_4 = arith.constant 0 : index
    %c0_5 = arith.constant 0 : index
    %8 = vector.load %arg1[%c0_4, %c0_5] : memref<512x256xbf16, #tpu.memory_space<vmem>>, vector<512x256xbf16>
    %cst_6 = arith.constant dense<0.000000e+00> : vector<1x256xf32>
    %9 = tpu.matmul %7, %8, %cst_6 {dimension_numbers = #tpu.dot_dimension_numbers<[1], [0], [0], [1], [0, 0, 1, 1], [], []>} : vector<1x512xbf16>, vector<512x256xbf16>, vector<1x256xf32> -> vector<1x256xf32>
    %10 = arith.negf %9 : vector<1x256xf32>
    %11 = math.exp %10 : vector<1x256xf32>
    %cst_7 = arith.constant 1.000000e+00 : f32
    %12 = vector.broadcast %cst_7 : f32 to vector<1x256xf32>
    %13 = arith.addf %12, %11 : vector<1x256xf32>
    %14 = arith.divf %12, %13 : vector<1x256xf32>
    %15 = vector.shape_cast %14 : vector<1x256xf32> to vector<1x1x256xf32>
    %16 = vector.broadcast %15 : vector<1x1x256xf32> to vector<1x4x256xf32>
    %17 = arith.mulf %0, %16 : vector<1x4x256xf32>
    %c0_8 = arith.constant 0 : index
    %c0_9 = arith.constant 0 : index
    %c0_10 = arith.constant 0 : index
    %18 = vector.load %arg3[%c0_8, %c0_9, %c0_10] : memref<1x4x256xf32, #tpu.memory_space<vmem>>, vector<1x4x256xf32>
    tpu.vector_store %arg3[%c0_8, %c0_9, %c0_10], %17 {strides = array<i32>} : memref<1x4x256xf32, #tpu.memory_space<vmem>>, vector<1x4x256xf32>,
    return
  }
  func.func @transform_0(%arg0: i32) -> (i32, i32) {
    %c0_i32 = arith.constant 0 : i32
    %c0_i32_0 = arith.constant 0 : i32
    %c0_i32_1 = arith.constant 0 : i32
    return %c0_i32, %c0_i32_0 : i32, i32
  }
  func.func @transform_1(%arg0: i32) -> (i32, i32, i32) {
    %c0_i32 = arith.constant 0 : i32
    %c0_i32_0 = arith.constant 0 : i32
    %c0_i32_1 = arith.constant 0 : i32
    return %arg0, %c0_i32, %c0_i32_0 : i32, i32, i32
  }
  func.func @transform_2(%arg0: i32) -> (i32, i32, i32) {
    %c0_i32 = arith.constant 0 : i32
    %c0_i32_0 = arith.constant 0 : i32
    %c0_i32_1 = arith.constant 0 : i32
    return %arg0, %c0_i32, %c0_i32_0 : i32, i32, i32
  }
}

</mosaic_0001>

<llo_original>
// kernel: tpu_custom_call.1
$region0: #{tpu_custom_call.1}
  #allocation0 [shape = 'u32[]', space=smem, size = 0x4, offset = 0x4, fixed_abs, tag = 'smem constant byte address 0x4 - core index']
  #allocation1 [shape = 'u32[72,128]{1,0:T(1,128)}', space=vmem, size = 0x9000, scoped, tag = 'internal scratch']
  %s0 = inlined_call_operand.hbm [shape: bf16[512,256], index: 0, kind: input, shape index: {}]
  %s1 = inlined_call_operand.hbm [shape: f32[2,4,256], index: 1, kind: input, shape index: {}]
  %s2 = inlined_call_operand.hbm [shape: f32[2,4,256], index: 2, kind: output, shape index: {}]
  %s3 = sld [smem:[#allocation0]]
  $region49: #{tpu_custom_call.1} parent=0
    _
  %s5 = ssub.s32 1, %s3
  %s6 = scalar_select 0, %s5, %s3
  $region1: #{tpu_custom_call.1} parent=0
    #allocation2 [shape = 'u8[262144]{0}', space=vmem, size = 0x40000, scoped, tag = 'input window, operand 0, single buffered']
    #allocation3 [shape = 's32[2]{0}', space=sflag, size = 0x8, scoped, tag = 'scoped memory for tpu_custom_call.1']
    #allocation4 [shape = 's32[2]{0}', space=sflag, size = 0x8, scoped, tag = 'scoped memory for tpu_custom_call.1']
    #allocation5 [shape = 'u8[8192]{0}', space=vmem, size = 0x2000, scoped, tag = 'input window, operand 1']
    #allocation6 [shape = 's32[2]{0}', space=sflag, size = 0x8, scoped, tag = 'scoped memory for tpu_custom_call.1']
    #allocation7 [shape = 'u8[8192]{0}', space=vmem, size = 0x2000, scoped, tag = 'output window, operand 0']
    %7 = vsyncpa [#allocation3], 0
    %8 = vsyncpa [#allocation6], 0
    %s9 = scalar_lea.sflag [#allocation6], 1
    %10 = vsyncpa %s9, 0
    %11 = vsyncpa [#allocation4], 0
    %s12 = scalar_lea.sflag [#allocation4], 1
    %13 = vsyncpa %s12, 0
    loop: start=0, step=1, limit=4
    $region2: #{tpu_custom_call.1} parent=1 // loop_pre_header
      _
    $region3: #{tpu_custom_call.1} parent=1 // loop_header
      %s15 = sphi 0, %s19
      %p16 = scmp.ge.s32.totalorder %s15, 4
      %s23 = sphi 0, %s23
      %s25 = sphi 0, %s23
      %s26 = sphi 0, %s25
      %s40 = sphi 0, %s26
      %s46 = sphi 0, %s48
      %s49 = sphi 0, %s46
      %s50 = sphi 0, %s49
      %s66 = sphi 0, %s50
      %s72 = sphi 0, %s74
      %s75 = sphi 0, %s72
      %s76 = sphi 0, %s75
      %s92 = sphi 0, %s76
    $region4: #{tpu_custom_call.1} parent=1 // loop_header_branch
      %18 = sbr.rel (%p16) target = $region8
    $region5: #{tpu_custom_call.1} parent=1 // loop_body
      %s20 = ssub.s32 %s15, 1
      %s21 = ssub.s32 %s15, 2
      %s22 = sadd.s32 %s15, 1
      %s24 = sadd.s32 %s23, 1
      %p27 = scmp.eq.s32.totalorder %s15, 1
      %p28 = scmp.ne.s32.totalorder %s23, %s25
      %p29 = scmp.eq.s32.totalorder %s15, 0
      %p30 = por %p28, %p29
      %p31 = scmp.ne.s32.totalorder %s23, %s25
      %p32 = scmp.eq.s32.totalorder %s20, 1
      %p33 = por %p31, %p32
      %p34 = scmp.ne.s32.totalorder %s25, %s26
      %p35 = scmp.eq.s32.totalorder %s20, 0
      %p36 = por %p34, %p35
      %p37 = scmp.ne.s32.totalorder %s25, %s26
      %p38 = scmp.eq.s32.totalorder %s21, 1
      %p39 = por %p37, %p38
      %p41 = scmp.ne.s32.totalorder %s26, %s40
      %p42 = scmp.eq.s32.totalorder %s21, 0
      %p43 = por %p41, %p42
      %s44 = ssub.s32 %s15, %s22
      %p45 = scmp.eq.s32.totalorder %s44, 0
      %s47 = sadd.s32 %s46, 1
      %s48 = scalar_select %p45, %s46, %s47
      %p51 = pneg %p45
      %p52 = scmp.eq.s32.totalorder %s15, 1
      %p53 = por %p51, %p52
      %p54 = scmp.ne.s32.totalorder %s46, %s49
      %p55 = scmp.eq.s32.totalorder %s15, 0
      %p56 = por %p54, %p55
      %p57 = scmp.ne.s32.totalorder %s46, %s49
      %p58 = scmp.eq.s32.totalorder %s20, 1
      %p59 = por %p57, %p58
      %p60 = scmp.ne.s32.totalorder %s49, %s50
      %p61 = scmp.eq.s32.totalorder %s20, 0
      %p62 = por %p60, %p61
      %p63 = scmp.ne.s32.totalorder %s49, %s50
      %p64 = scmp.eq.s32.totalorder %s21, 1
      %p65 = por %p63, %p64
      %p67 = scmp.ne.s32.totalorder %s50, %s66
      %p68 = scmp.eq.s32.totalorder %s21, 0
      %p69 = por %p67, %p68
      %s70 = ssub.s32 %s15, %s22
      %p71 = scmp.eq.s32.totalorder %s70, 0
      %s73 = sadd.s32 %s72, 1
      %s74 = scalar_select %p71, %s72, %s73
      %p77 = pneg %p71
      %p78 = scmp.eq.s32.totalorder %s15, 1
      %p79 = por %p77, %p78
      %p80 = scmp.ne.s32.totalorder %s72, %s75
      %p81 = scmp.eq.s32.totalorder %s15, 0
      %p82 = por %p80, %p81
      %p83 = scmp.ne.s32.totalorder %s72, %s75
      %p84 = scmp.eq.s32.totalorder %s20, 1
      %p85 = por %p83, %p84
      %p86 = scmp.ne.s32.totalorder %s75, %s76
      %p87 = scmp.eq.s32.totalorder %s20, 0
      %p88 = por %p86, %p87
      %p89 = scmp.ne.s32.totalorder %s75, %s76
      %p90 = scmp.eq.s32.totalorder %s21, 1
      %p91 = por %p89, %p90
      %p93 = scmp.ne.s32.totalorder %s76, %s92
      %p94 = scmp.eq.s32.totalorder %s21, 0
      %p95 = por %p93, %p94
      %p96 = scmp.le.s32.totalorder 1, %s15
      %p97 = scmp.lt.s32.totalorder %s15, 3
      %p98 = pnand %p96, %p97
      %p99 = pneg %p98
      // Predicated region
      $region9: #{tpu_custom_call.1} parent=5 // pred_check
        _
      $region10: #{tpu_custom_call.1} parent=5 // pred_check_branch
        %101 = sbr.rel (%p98) target = $region12
      $region11: #{tpu_custom_call.1} parent=5 // pred_region
        %s102 = ssub.s32 %s15, 1
        // Predicated region
        $region13: #{tpu_custom_call.1} parent=11 // pred_check
          %p103 = pneg %p36
        $region14: #{tpu_custom_call.1} parent=11 // pred_check_branch
          %105 = sbr.rel (%p103) target = $region16
        $region15: #{tpu_custom_call.1} parent=11 // pred_region
          %107 = vsyncadd [#allocation3], 0
          %s108 = sshll.u32 %s0, 4
          %s109 = int_to_ptr.hbm [resolvable:$true] %s108
          %s110 = sshll.u32 [#allocation2], 4
          %s111 = int_to_ptr.vmem [resolvable:$true] %s110
          %116 = dma.hbm_to_vmem [thread:$0]  %s109, 8192, %s111, [#allocation3], 128, 128, 8
        $region16: #{tpu_custom_call.1} parent=11 // pred_fallthru
          _
      $region12: #{tpu_custom_call.1} parent=5 // pred_fallthru
        _
      %p117 = scmp.lt.s32.totalorder %s15, 2
      // Predicated region
      $region17: #{tpu_custom_call.1} parent=5 // pred_check
        %p118 = pneg %p117
      $region18: #{tpu_custom_call.1} parent=5 // pred_check_branch
        %120 = sbr.rel (%p118) target = $region20
      $region19: #{tpu_custom_call.1} parent=5 // pred_region
        // Predicated region
        $region21: #{tpu_custom_call.1} parent=19 // pred_check
          %p121 = pneg %p56
        $region22: #{tpu_custom_call.1} parent=19 // pred_check_branch
          %123 = sbr.rel (%p121) target = $region24
        $region23: #{tpu_custom_call.1} parent=19 // pred_region
          %s124 = sand.u32 %s46, 1
          %s125 = scalar_lea.sflag [#allocation6], %s124
          %s126 = sand.u32 %s46, 1
          %s127 = smul.addr %s126, 8
          %s128 = scalar_lea.vmem [#allocation5], %s127
          %130 = vsyncadd %s125, 0
          %s131 = smul.addr %s15, 2
          %s132 = smul.addr %s131, 4
          %s133 = scalar_lea.hbm %s1, %s132
          %s135 = sshll.u32 %s133, 4
          %s136 = int_to_ptr.hbm [resolvable:$true] %s135
          %s137 = sshll.u32 %s128, 4
          %s138 = int_to_ptr.vmem [resolvable:$true] %s137
          %140 = dma.hbm_to_vmem [thread:$0]  %s136, 128, %s138, %s125
        $region24: #{tpu_custom_call.1} parent=19 // pred_fallthru
          _
      $region20: #{tpu_custom_call.1} parent=5 // pred_fallthru
        _
      %p141 = scmp.le.s32.totalorder 1, %s15
      %p142 = scmp.lt.s32.totalorder %s15, 3
      %p143 = pnand %p141, %p142
      %p144 = pneg %p143
      // Predicated region
      $region25: #{tpu_custom_call.1} parent=5 // pred_check
        _
      $region26: #{tpu_custom_call.1} parent=5 // pred_check_branch
        %146 = sbr.rel (%p143) target = $region28
      $region27: #{tpu_custom_call.1} parent=5 // pred_region
        %s147 = ssub.s32 %s15, 1
        // Predicated region
        $region29: #{tpu_custom_call.1} parent=27 // pred_check
          %p148 = pneg %p36
        $region30: #{tpu_custom_call.1} parent=27 // pred_check_branch
          %150 = sbr.rel (%p148) target = $region32
        $region31: #{tpu_custom_call.1} parent=27 // pred_region
          %152 = dma.done [#allocation3], 8192
        $region32: #{tpu_custom_call.1} parent=27 // pred_fallthru
          _
        %s153 = sand.u32 %s49, 1
        %s154 = scalar_lea.sflag [#allocation6], %s153
        %s155 = sand.u32 %s49, 1
        %s156 = smul.addr %s155, 8
        %s157 = scalar_lea.vmem [#allocation5], %s156
        // Predicated region
        $region33: #{tpu_custom_call.1} parent=27 // pred_check
          %p158 = pneg %p62
        $region34: #{tpu_custom_call.1} parent=27 // pred_check_branch
          %160 = sbr.rel (%p158) target = $region36
        $region35: #{tpu_custom_call.1} parent=27 // pred_region
          %162 = dma.done %s154, 128
        $region36: #{tpu_custom_call.1} parent=27 // pred_fallthru
          _
        %p163 = pneg %p36
        %p164 = pneg %p33
        %s165 = sand.u32 %s49, 1
        %s166 = scalar_lea.sflag [#allocation6], %s165
        %s167 = sand.u32 %s49, 1
        %s168 = smul.addr %s167, 8
        %s169 = scalar_lea.vmem [#allocation5], %s168
        %p170 = pneg %p62
        %p171 = pneg %p59
        %p172 = pneg %p88
        %p173 = pneg %p85
        %s174 = sand.u32 %s75, 1
        %s175 = scalar_lea.sflag [#allocation4], %s174
        %s176 = sand.u32 %s75, 1
        %s177 = smul.addr %s176, 8
        %s178 = scalar_lea.vmem [#allocation7], %s177
        %v179 = vld [vmem:[%s157] sm:$0xff]
        %181 = vst [vmem:[#allocation1] ss:$2 sm:$0xff] %v179
        %v182 = vld.sshfl [vmem:[#allocation1] sm:$0xff pattern:$0x75316420]
        %v183 = vld.sshfl [vmem:[#allocation1 + $0x8] sm:$0xff pattern:$0x75316420]
        %vm186 = vcmask 1043456
        %v187 = vsel %vm186, %v182, 0.0
        %v188 = vrot.slane %v187, 4
        %v189 = vadd.f32 %v187, %v188
        %v190 = vrot.slane %v189, 2
        %v191 = vadd.f32 %v189, %v190
        %v192 = vrot.slane %v191, 1
        %v193 = vadd.f32 %v191, %v192
        %v194 = vsel %vm186, %v183, 0.0
        %v195 = vrot.slane %v194, 4
        %v196 = vadd.f32 %v194, %v195
        %v197 = vrot.slane %v196, 2
        %v198 = vadd.f32 %v196, %v197
        %v199 = vrot.slane %v198, 1
        %v200 = vadd.f32 %v198, %v199
        %v201 = vrcp.pop 4.0
        %v202 = vmul.f32 4.0, %v201
        %v203 = vsub.f32 1.0, %v202
        %v204 = vmul.f32 %v201, %v203
        %v205 = vadd.f32 %v201, %v204
        %vm206 = vweird.f32 %v201
        %v207 = vsel %vm206, %v201, %v205
        %v208 = vmul.f32 %v193, %v207
        %v209 = vmul.f32 %v200, %v207
        %210 = vst [vmem:[#allocation1] ss:$2 sm:$0xff] %v179
        %v211 = vld.sshfl [vmem:[#allocation1] sm:$0xff pattern:$0x75316420]
        %v212 = vld.sshfl [vmem:[#allocation1 + $0x8] sm:$0xff pattern:$0x75316420]
        %v215 = vsel %vm186, %v211, -inf
        %v216 = vrot.slane %v215, 4
        %v217 = vmax.f32 %v215, %v216
        %v218 = vrot.slane %v217, 2
        %v219 = vmax.f32 %v217, %v218
        %v220 = vrot.slane %v219, 1
        %v221 = vmax.f32 %v219, %v220
        %v222 = vsel %vm186, %v212, -inf
        %v223 = vrot.slane %v222, 4
        %v224 = vmax.f32 %v222, %v223
        %v225 = vrot.slane %v224, 2
        %v226 = vmax.f32 %v224, %v225
        %v227 = vrot.slane %v226, 1
        %v228 = vmax.f32 %v226, %v227
        %v229 = vpack.c.bf16 %v209, %v208
        %v230 = vpack.c.bf16 %v228, %v221
        %v232 = vperm.slane %v229, 0
        %v233 = vperm.slane %v229, 4
        %v237 = vperm.slane %v230, 0
        %v238 = vperm.slane %v230, 4
        %v241 = vld [vmem:[#allocation2] sm:$0xff]
        %v242 = vld [vmem:[#allocation2 + $0x8] sm:$0xff]
        %v243 = vld [vmem:[#allocation2 + $0x10] sm:$0xff]
        %v244 = vld [vmem:[#allocation2 + $0x18] sm:$0xff]
        %v245 = vld [vmem:[#allocation2 + $0x20] sm:$0xff]
        %v246 = vld [vmem:[#allocation2 + $0x28] sm:$0xff]
        %v247 = vld [vmem:[#allocation2 + $0x30] sm:$0xff]
        %v248 = vld [vmem:[#allocation2 + $0x38] sm:$0xff]
        %v249 = vld [vmem:[#allocation2 + $0x40] sm:$0xff]
        %v250 = vld [vmem:[#allocation2 + $0x48] sm:$0xff]
        %v251 = vld [vmem:[#allocation2 + $0x50] sm:$0xff]
        %v252 = vld [vmem:[#allocation2 + $0x58] sm:$0xff]
        %v253 = vld [vmem:[#allocation2 + $0x60] sm:$0xff]
        %v254 = vld [vmem:[#allocation2 + $0x68] sm:$0xff]
        %v255 = vld [vmem:[#allocation2 + $0x70] sm:$0xff]
        %v256 = vld [vmem:[#allocation2 + $0x78] sm:$0xff]
        %v257 = vld [vmem:[#allocation2 + $0x80] sm:$0xff]
        %v258 = vld [vmem:[#allocation2 + $0x88] sm:$0xff]
        %v259 = vld [vmem:[#allocation2 + $0x90] sm:$0xff]
        %v260 = vld [vmem:[#allocation2 + $0x98] sm:$0xff]
        %v261 = vld [vmem:[#allocation2 + $0xa0] sm:$0xff]
        %v262 = vld [vmem:[#allocation2 + $0xa8] sm:$0xff]
        %v263 = vld [vmem:[#allocation2 + $0xb0] sm:$0xff]
        %v264 = vld [vmem:[#allocation2 + $0xb8] sm:$0xff]
        %v265 = vld [vmem:[#allocation2 + $0xc0] sm:$0xff]
        %v266 = vld [vmem:[#allocation2 + $0xc8] sm:$0xff]
        %v267 = vld [vmem:[#allocation2 + $0xd0] sm:$0xff]
        %v268 = vld [vmem:[#allocation2 + $0xd8] sm:$0xff]
        %v269 = vld [vmem:[#allocation2 + $0xe0] sm:$0xff]
        %v270 = vld [vmem:[#allocation2 + $0xe8] sm:$0xff]
        %v271 = vld [vmem:[#allocation2 + $0xf0] sm:$0xff]
        %v272 = vld [vmem:[#allocation2 + $0xf8] sm:$0xff]
        %v273 = vld [vmem:[#allocation2 + $0x100] sm:$0xff]
        %v274 = vld [vmem:[#allocation2 + $0x108] sm:$0xff]
        %v275 = vld [vmem:[#allocation2 + $0x110] sm:$0xff]
        %v276 = vld [vmem:[#allocation2 + $0x118] sm:$0xff]
        %v277 = vld [vmem:[#allocation2 + $0x120] sm:$0xff]
        %v278 = vld [vmem:[#allocation2 + $0x128] sm:$0xff]
        %v279 = vld [vmem:[#allocation2 + $0x130] sm:$0xff]
        %v280 = vld [vmem:[#allocation2 + $0x138] sm:$0xff]
        %v281 = vld [vmem:[#allocation2 + $0x140] sm:$0xff]
        %v282 = vld [vmem:[#allocation2 + $0x148] sm:$0xff]
        %v283 = vld [vmem:[#allocation2 + $0x150] sm:$0xff]
        %v284 = vld [vmem:[#allocation2 + $0x158] sm:$0xff]
        %v285 = vld [vmem:[#allocation2 + $0x160] sm:$0xff]
        %v286 = vld [vmem:[#allocation2 + $0x168] sm:$0xff]
        %v287 = vld [vmem:[#allocation2 + $0x170] sm:$0xff]
        %v288 = vld [vmem:[#allocation2 + $0x178] sm:$0xff]
        %v289 = vld [vmem:[#allocation2 + $0x180] sm:$0xff]
        %v290 = vld [vmem:[#allocation2 + $0x188] sm:$0xff]
        %v291 = vld [vmem:[#allocation2 + $0x190] sm:$0xff]
        %v292 = vld [vmem:[#allocation2 + $0x198] sm:$0xff]
        %v293 = vld [vmem:[#allocation2 + $0x1a0] sm:$0xff]
        %v294 = vld [vmem:[#allocation2 + $0x1a8] sm:$0xff]
        %v295 = vld [vmem:[#allocation2 + $0x1b0] sm:$0xff]
        %v296 = vld [vmem:[#allocation2 + $0x1b8] sm:$0xff]
        %v297 = vld [vmem:[#allocation2 + $0x1c0] sm:$0xff]
        %v298 = vld [vmem:[#allocation2 + $0x1c8] sm:$0xff]
        %v299 = vld [vmem:[#allocation2 + $0x1d0] sm:$0xff]
        %v300 = vld [vmem:[#allocation2 + $0x1d8] sm:$0xff]
        %v301 = vld [vmem:[#allocation2 + $0x1e0] sm:$0xff]
        %v302 = vld [vmem:[#allocation2 + $0x1e8] sm:$0xff]
        %v303 = vld [vmem:[#allocation2 + $0x1f0] sm:$0xff]
        %v304 = vld [vmem:[#allocation2 + $0x1f8] sm:$0xff]
        %v369 = vunpack.c.l.b16 %v241
        %v370 = vunpack.c.h.b16 %v241
        %v371 = vunpack.c.l.b16 %v242
        %v372 = vunpack.c.h.b16 %v242
        %v373 = vunpack.c.l.b16 %v243
        %v374 = vunpack.c.h.b16 %v243
        %v375 = vunpack.c.l.b16 %v244
        %v376 = vunpack.c.h.b16 %v244
        %v377 = vunpack.c.l.b16 %v245
        %v378 = vunpack.c.h.b16 %v245
        %v379 = vunpack.c.l.b16 %v246
        %v380 = vunpack.c.h.b16 %v246
        %v381 = vunpack.c.l.b16 %v247
        %v382 = vunpack.c.h.b16 %v247
        %v383 = vunpack.c.l.b16 %v248
        %v384 = vunpack.c.h.b16 %v248
        %v385 = vunpack.c.l.b16 %v249
        %v386 = vunpack.c.h.b16 %v249
        %v387 = vunpack.c.l.b16 %v250
        %v388 = vunpack.c.h.b16 %v250
        %v389 = vunpack.c.l.b16 %v251
        %v390 = vunpack.c.h.b16 %v251
        %v391 = vunpack.c.l.b16 %v252
        %v392 = vunpack.c.h.b16 %v252
        %v393 = vunpack.c.l.b16 %v253
        %v394 = vunpack.c.h.b16 %v253
        %v395 = vunpack.c.l.b16 %v254
        %v396 = vunpack.c.h.b16 %v254
        %v397 = vunpack.c.l.b16 %v255
        %v398 = vunpack.c.h.b16 %v255
        %v399 = vunpack.c.l.b16 %v256
        %v400 = vunpack.c.h.b16 %v256
        %v401 = vunpack.c.l.b16 %v257
        %v402 = vunpack.c.h.b16 %v257
        %v403 = vunpack.c.l.b16 %v258
        %v404 = vunpack.c.h.b16 %v258
        %v405 = vunpack.c.l.b16 %v259
        %v406 = vunpack.c.h.b16 %v259
        %v407 = vunpack.c.l.b16 %v260
        %v408 = vunpack.c.h.b16 %v260
        %v409 = vunpack.c.l.b16 %v261
        %v410 = vunpack.c.h.b16 %v261
        %v411 = vunpack.c.l.b16 %v262
        %v412 = vunpack.c.h.b16 %v262
        %v413 = vunpack.c.l.b16 %v263
        %v414 = vunpack.c.h.b16 %v263
        %v415 = vunpack.c.l.b16 %v264
        %v416 = vunpack.c.h.b16 %v264
        %v417 = vunpack.c.l.b16 %v265
        %v418 = vunpack.c.h.b16 %v265
        %v419 = vunpack.c.l.b16 %v266
        %v420 = vunpack.c.h.b16 %v266
        %v421 = vunpack.c.l.b16 %v267
        %v422 = vunpack.c.h.b16 %v267
        %v423 = vunpack.c.l.b16 %v268
        %v424 = vunpack.c.h.b16 %v268
        %v425 = vunpack.c.l.b16 %v269
        %v426 = vunpack.c.h.b16 %v269
        %v427 = vunpack.c.l.b16 %v270
        %v428 = vunpack.c.h.b16 %v270
        %v429 = vunpack.c.l.b16 %v271
        %v430 = vunpack.c.h.b16 %v271
        %v431 = vunpack.c.l.b16 %v272
        %v432 = vunpack.c.h.b16 %v272
        %v433 = vunpack.c.l.b16 %v273
        %v434 = vunpack.c.h.b16 %v273
        %v435 = vunpack.c.l.b16 %v274
        %v436 = vunpack.c.h.b16 %v274
        %v437 = vunpack.c.l.b16 %v275
        %v438 = vunpack.c.h.b16 %v275
        %v439 = vunpack.c.l.b16 %v276
        %v440 = vunpack.c.h.b16 %v276
        %v441 = vunpack.c.l.b16 %v277
        %v442 = vunpack.c.h.b16 %v277
        %v443 = vunpack.c.l.b16 %v278
        %v444 = vunpack.c.h.b16 %v278
        %v445 = vunpack.c.l.b16 %v279
        %v446 = vunpack.c.h.b16 %v279
        %v447 = vunpack.c.l.b16 %v280
        %v448 = vunpack.c.h.b16 %v280
        %v449 = vunpack.c.l.b16 %v281
        %v450 = vunpack.c.h.b16 %v281
        %v451 = vunpack.c.l.b16 %v282
        %v452 = vunpack.c.h.b16 %v282
        %v453 = vunpack.c.l.b16 %v283
        %v454 = vunpack.c.h.b16 %v283
        %v455 = vunpack.c.l.b16 %v284
        %v456 = vunpack.c.h.b16 %v284
        %v457 = vunpack.c.l.b16 %v285
        %v458 = vunpack.c.h.b16 %v285
        %v459 = vunpack.c.l.b16 %v286
        %v460 = vunpack.c.h.b16 %v286
        %v461 = vunpack.c.l.b16 %v287
        %v462 = vunpack.c.h.b16 %v287
        %v463 = vunpack.c.l.b16 %v288
        %v464 = vunpack.c.h.b16 %v288
        %v465 = vunpack.c.l.b16 %v289
        %v466 = vunpack.c.h.b16 %v289
        %v467 = vunpack.c.l.b16 %v290
        %v468 = vunpack.c.h.b16 %v290
        %v469 = vunpack.c.l.b16 %v291
        %v470 = vunpack.c.h.b16 %v291
        %v471 = vunpack.c.l.b16 %v292
        %v472 = vunpack.c.h.b16 %v292
        %v473 = vunpack.c.l.b16 %v293
        %v474 = vunpack.c.h.b16 %v293
        %v475 = vunpack.c.l.b16 %v294
        %v476 = vunpack.c.h.b16 %v294
        %v477 = vunpack.c.l.b16 %v295
        %v478 = vunpack.c.h.b16 %v295
        %v479 = vunpack.c.l.b16 %v296
        %v480 = vunpack.c.h.b16 %v296
        %v481 = vunpack.c.l.b16 %v297
        %v482 = vunpack.c.h.b16 %v297
        %v483 = vunpack.c.l.b16 %v298
        %v484 = vunpack.c.h.b16 %v298
        %v485 = vunpack.c.l.b16 %v299
        %v486 = vunpack.c.h.b16 %v299
        %v487 = vunpack.c.l.b16 %v300
        %v488 = vunpack.c.h.b16 %v300
        %v489 = vunpack.c.l.b16 %v301
        %v490 = vunpack.c.h.b16 %v301
        %v491 = vunpack.c.l.b16 %v302
        %v492 = vunpack.c.h.b16 %v302
        %v493 = vunpack.c.l.b16 %v303
        %v494 = vunpack.c.h.b16 %v303
        %v495 = vunpack.c.l.b16 %v304
        %v496 = vunpack.c.h.b16 %v304
        %v497 = vpack.c.b16 %v371, %v369
        %v498 = vpack.c.b16 %v372, %v370
        %v499 = vpack.c.b16 %v375, %v373
        %v500 = vpack.c.b16 %v376, %v374
        %v501 = vpack.c.b16 %v379, %v377
        %v502 = vpack.c.b16 %v380, %v378
        %v503 = vpack.c.b16 %v383, %v381
        %v504 = vpack.c.b16 %v384, %v382
        %v505 = vpack.c.b16 %v387, %v385
        %v506 = vpack.c.b16 %v388, %v386
        %v507 = vpack.c.b16 %v391, %v389
        %v508 = vpack.c.b16 %v392, %v390
        %v509 = vpack.c.b16 %v395, %v393
        %v510 = vpack.c.b16 %v396, %v394
        %v511 = vpack.c.b16 %v399, %v397
        %v512 = vpack.c.b16 %v400, %v398
        %v513 = vpack.c.b16 %v403, %v401
        %v514 = vpack.c.b16 %v404, %v402
        %v515 = vpack.c.b16 %v407, %v405
        %v516 = vpack.c.b16 %v408, %v406
        %v517 = vpack.c.b16 %v411, %v409
        %v518 = vpack.c.b16 %v412, %v410
        %v519 = vpack.c.b16 %v415, %v413
        %v520 = vpack.c.b16 %v416, %v414
        %v521 = vpack.c.b16 %v419, %v417
        %v522 = vpack.c.b16 %v420, %v418
        %v523 = vpack.c.b16 %v423, %v421
        %v524 = vpack.c.b16 %v424, %v422
        %v525 = vpack.c.b16 %v427, %v425
        %v526 = vpack.c.b16 %v428, %v426
        %v527 = vpack.c.b16 %v431, %v429
        %v528 = vpack.c.b16 %v432, %v430
        %v529 = vpack.c.b16 %v435, %v433
        %v530 = vpack.c.b16 %v436, %v434
        %v531 = vpack.c.b16 %v439, %v437
        %v532 = vpack.c.b16 %v440, %v438
        %v533 = vpack.c.b16 %v443, %v441
        %v534 = vpack.c.b16 %v444, %v442
        %v535 = vpack.c.b16 %v447, %v445
        %v536 = vpack.c.b16 %v448, %v446
        %v537 = vpack.c.b16 %v451, %v449
        %v538 = vpack.c.b16 %v452, %v450
        %v539 = vpack.c.b16 %v455, %v453
        %v540 = vpack.c.b16 %v456, %v454
        %v541 = vpack.c.b16 %v459, %v457
        %v542 = vpack.c.b16 %v460, %v458
        %v543 = vpack.c.b16 %v463, %v461
        %v544 = vpack.c.b16 %v464, %v462
        %v545 = vpack.c.b16 %v467, %v465
        %v546 = vpack.c.b16 %v468, %v466
        %v547 = vpack.c.b16 %v471, %v469
        %v548 = vpack.c.b16 %v472, %v470
        %v549 = vpack.c.b16 %v475, %v473
        %v550 = vpack.c.b16 %v476, %v474
        %v551 = vpack.c.b16 %v479, %v477
        %v552 = vpack.c.b16 %v480, %v478
        %v553 = vpack.c.b16 %v483, %v481
        %v554 = vpack.c.b16 %v484, %v482
        %v555 = vpack.c.b16 %v487, %v485
        %v556 = vpack.c.b16 %v488, %v486
        %v557 = vpack.c.b16 %v491, %v489
        %v558 = vpack.c.b16 %v492, %v490
        %v559 = vpack.c.b16 %v495, %v493
        %v560 = vpack.c.b16 %v496, %v494
        %625 = vmatpush.bf16.msra.mxu0 %v511
        %626 = vmatpush.bf16.msra.mxu0 %v509
        %627 = vmatpush.bf16.msra.mxu0 %v507
        %628 = vmatpush.bf16.msra.mxu0 %v505
        %629 = vmatpush.bf16.msra.mxu0 %v503
        %630 = vmatpush.bf16.msra.mxu0 %v501
        %631 = vmatpush.bf16.msra.mxu0 %v499
        %632 = vmatpush.bf16.msra.mxu0 %v497
        %633 = vmatmul.bf16.gmra.mxu0 %v232
        %v634 = vpop.f32.mrf.mxu0
        %v635 = vadd.f32 0.0, %v634
        %v636 = vpop.f32.mrf.mxu0
        %637 = vdwg.mxu0
        %638 = vmatpush.bf16.msra.mxu0 %v527
        %639 = vmatpush.bf16.msra.mxu0 %v525
        %640 = vmatpush.bf16.msra.mxu0 %v523
        %641 = vmatpush.bf16.msra.mxu0 %v521
        %642 = vmatpush.bf16.msra.mxu0 %v519
        %643 = vmatpush.bf16.msra.mxu0 %v517
        %644 = vmatpush.bf16.msra.mxu0 %v515
        %645 = vmatpush.bf16.msra.mxu0 %v513
        %646 = vmatmul.bf16.gmra.mxu0 %v233
        %v647 = vpop.f32.mrf.mxu0
        %v648 = vadd.f32 %v635, %v647
        %v649 = vpop.f32.mrf.mxu0
        %650 = vdwg.mxu0
        %651 = vmatpush.bf16.msra.mxu0 %v543
        %652 = vmatpush.bf16.msra.mxu0 %v541
        %653 = vmatpush.bf16.msra.mxu0 %v539
        %654 = vmatpush.bf16.msra.mxu0 %v537
        %655 = vmatpush.bf16.msra.mxu0 %v535
        %656 = vmatpush.bf16.msra.mxu0 %v533
        %657 = vmatpush.bf16.msra.mxu0 %v531
        %658 = vmatpush.bf16.msra.mxu0 %v529
        %659 = vmatmul.bf16.gmra.mxu0 %v237
        %v660 = vpop.f32.mrf.mxu0
        %v661 = vadd.f32 %v648, %v660
        %v662 = vpop.f32.mrf.mxu0
        %663 = vdwg.mxu0
        %664 = vmatpush.bf16.msra.mxu0 %v559
        %665 = vmatpush.bf16.msra.mxu0 %v557
        %666 = vmatpush.bf16.msra.mxu0 %v555
        %667 = vmatpush.bf16.msra.mxu0 %v553
        %668 = vmatpush.bf16.msra.mxu0 %v551
        %669 = vmatpush.bf16.msra.mxu0 %v549
        %670 = vmatpush.bf16.msra.mxu0 %v547
        %671 = vmatpush.bf16.msra.mxu0 %v545
        %672 = vmatmul.bf16.gmra.mxu0 %v238
        %v673 = vpop.f32.mrf.mxu0
        %v674 = vadd.f32 %v661, %v673
        %v675 = vpop.f32.mrf.mxu0
        %676 = vdwg.mxu0
        %677 = vmatpush.bf16.msra.mxu0 %v512
        %678 = vmatpush.bf16.msra.mxu0 %v510
        %679 = vmatpush.bf16.msra.mxu0 %v508
        %680 = vmatpush.bf16.msra.mxu0 %v506
        %681 = vmatpush.bf16.msra.mxu0 %v504
        %682 = vmatpush.bf16.msra.mxu0 %v502
        %683 = vmatpush.bf16.msra.mxu0 %v500
        %684 = vmatpush.bf16.msra.mxu0 %v498
        %685 = vmatmul.bf16.gmra.mxu0 %v232
        %v686 = vpop.f32.mrf.mxu0
        %v687 = vadd.f32 0.0, %v686
        %v688 = vpop.f32.mrf.mxu0
        %689 = vdwg.mxu0
        %690 = vmatpush.bf16.msra.mxu0 %v528
        %691 = vmatpush.bf16.msra.mxu0 %v526
        %692 = vmatpush.bf16.msra.mxu0 %v524
        %693 = vmatpush.bf16.msra.mxu0 %v522
        %694 = vmatpush.bf16.msra.mxu0 %v520
        %695 = vmatpush.bf16.msra.mxu0 %v518
        %696 = vmatpush.bf16.msra.mxu0 %v516
        %697 = vmatpush.bf16.msra.mxu0 %v514
        %698 = vmatmul.bf16.gmra.mxu0 %v233
        %v699 = vpop.f32.mrf.mxu0
        %v700 = vadd.f32 %v687, %v699
        %v701 = vpop.f32.mrf.mxu0
        %702 = vdwg.mxu0
        %703 = vmatpush.bf16.msra.mxu0 %v544
        %704 = vmatpush.bf16.msra.mxu0 %v542
        %705 = vmatpush.bf16.msra.mxu0 %v540
        %706 = vmatpush.bf16.msra.mxu0 %v538
        %707 = vmatpush.bf16.msra.mxu0 %v536
        %708 = vmatpush.bf16.msra.mxu0 %v534
        %709 = vmatpush.bf16.msra.mxu0 %v532
        %710 = vmatpush.bf16.msra.mxu0 %v530
        %711 = vmatmul.bf16.gmra.mxu0 %v237
        %v712 = vpop.f32.mrf.mxu0
        %v713 = vadd.f32 %v700, %v712
        %v714 = vpop.f32.mrf.mxu0
        %715 = vdwg.mxu0
        %716 = vmatpush.bf16.msra.mxu0 %v560
        %717 = vmatpush.bf16.msra.mxu0 %v558
        %718 = vmatpush.bf16.msra.mxu0 %v556
        %719 = vmatpush.bf16.msra.mxu0 %v554
        %720 = vmatpush.bf16.msra.mxu0 %v552
        %721 = vmatpush.bf16.msra.mxu0 %v550
        %722 = vmatpush.bf16.msra.mxu0 %v548
        %723 = vmatpush.bf16.msra.mxu0 %v546
        %724 = vmatmul.bf16.gmra.mxu0 %v238
        %v725 = vpop.f32.mrf.mxu0
        %v726 = vadd.f32 %v713, %v725
        %v727 = vpop.f32.mrf.mxu0
        %728 = vdwg.mxu0
        %v729 = vxor.u32 %v674, 2147483648
        %v730 = vxor.u32 %v726, 2147483648
        %v731 = vmul.f32 %v729, 1.442695
        %v732 = vpow.pop %v731
        %v733 = vmul.f32 %v730, 1.442695
        %v734 = vpow.pop %v733
        %v735 = vadd.f32 %v732, 1.0
        %v736 = vadd.f32 %v734, 1.0
        %v737 = vrcp.pop %v735
        %v738 = vmul.f32 %v735, %v737
        %v739 = vsub.f32 1.0, %v738
        %v740 = vmul.f32 %v737, %v739
        %v741 = vadd.f32 %v737, %v740
        %vm742 = vweird.f32 %v735
        %vm743 = vweird.f32 %v737
        %vm744 = vmor %vm742, %vm743
        %v745 = vsel %vm744, %v737, %v741
        %v746 = vand.u32 2147483647, %v735
        %vm747 = vcmp.eq.f32.partialorder %v746, 8.507059e+37
        %v748 = vand.u32 %v735, 2147483648
        %v749 = vor.u32 1.1754944e-38, %v748
        %v750 = vsel %vm747, %v749, %v745
        %v751 = vmul.f32 1.0, %v750
        %v752 = vrcp.pop %v736
        %v753 = vmul.f32 %v736, %v752
        %v754 = vsub.f32 1.0, %v753
        %v755 = vmul.f32 %v752, %v754
        %v756 = vadd.f32 %v752, %v755
        %vm757 = vweird.f32 %v736
        %vm758 = vweird.f32 %v752
        %vm759 = vmor %vm757, %vm758
        %v760 = vsel %vm759, %v752, %v756
        %v761 = vand.u32 2147483647, %v736
        %vm762 = vcmp.eq.f32.partialorder %v761, 8.507059e+37
        %v763 = vand.u32 %v736, 2147483648
        %v764 = vor.u32 1.1754944e-38, %v763
        %v765 = vsel %vm762, %v764, %v760
        %v766 = vmul.f32 1.0, %v765
        %v767 = vperm.slane %v751, 0
        %v768 = vperm.slane %v766, 0
        %v771 = vrot.slane %v768, 4
        %v772 = vsel %vm186, %v767, %v771
        %v774 = vmul.f32 %v179, %v772
        %775 = vst [vmem:[%s178] sm:$0xff] %v774
        %s776 = sand.u32 %s75, 1
        %s777 = scalar_lea.sflag [#allocation4], %s776
        %s778 = sand.u32 %s75, 1
        %s779 = smul.addr %s778, 8
        %s780 = scalar_lea.vmem [#allocation7], %s779
        // Predicated region
        $region37: #{tpu_custom_call.1} parent=27 // pred_check
          %p781 = pneg %p85
        $region38: #{tpu_custom_call.1} parent=27 // pred_check_branch
          %783 = sbr.rel (%p781) target = $region40
        $region39: #{tpu_custom_call.1} parent=27 // pred_region
          %785 = vsyncadd %s777, 0
          %s786 = smul.addr %s20, 2
          %s787 = smul.addr %s786, 4
          %s788 = scalar_lea.hbm %s2, %s787
          %s790 = sshll.u32 %s780, 4
          %s791 = int_to_ptr.vmem [resolvable:$true] %s790
          %s792 = sshll.u32 %s788, 4
          %s793 = int_to_ptr.hbm [resolvable:$true] %s792
          %795 = dma.vmem_to_hbm [thread:$0]  %s791, 128, %s793, %s777
        $region40: #{tpu_custom_call.1} parent=27 // pred_fallthru
          _
      $region28: #{tpu_custom_call.1} parent=5 // pred_fallthru
        _
      %p796 = scmp.le.s32.totalorder 2, %s15
      // Predicated region
      $region41: #{tpu_custom_call.1} parent=5 // pred_check
        %p797 = pneg %p796
      $region42: #{tpu_custom_call.1} parent=5 // pred_check_branch
        %799 = sbr.rel (%p797) target = $region44
      $region43: #{tpu_custom_call.1} parent=5 // pred_region
        %s800 = ssub.s32 %s15, 2
        // Predicated region
        $region45: #{tpu_custom_call.1} parent=43 // pred_check
          %p801 = pneg %p91
        $region46: #{tpu_custom_call.1} parent=43 // pred_check_branch
          %803 = sbr.rel (%p801) target = $region48
        $region47: #{tpu_custom_call.1} parent=43 // pred_region
          %s804 = sand.u32 %s76, 1
          %s805 = scalar_lea.sflag [#allocation4], %s804
          %s806 = sand.u32 %s76, 1
          %s807 = smul.addr %s806, 8
          %s808 = scalar_lea.vmem [#allocation7], %s807
          %810 = dma.done %s805, 128
        $region48: #{tpu_custom_call.1} parent=43 // pred_fallthru
          _
      $region44: #{tpu_custom_call.1} parent=5 // pred_fallthru
        _
    $region6: #{tpu_custom_call.1} parent=1 // loop_footer
      %s19 = sadd.s32 1, %s15
    $region7: #{tpu_custom_call.1} parent=1 // loop_footer_branch
      %14 = sbr.rel target = $region3
    $region8: #{tpu_custom_call.1} parent=1 // loop_exit
      _
    %811 = vsyncpa [#allocation3], 1
    %s812 = scalar_lea.sflag [#allocation3], 1
    %813 = vsyncpa %s812, 1
    %814 = vsyncpa [#allocation6], 1
    %s815 = scalar_lea.sflag [#allocation6], 1
    %816 = vsyncpa %s815, 1
    %817 = vsyncpa [#allocation4], 1
    %s818 = scalar_lea.sflag [#allocation4], 1
    %819 = vsyncpa %s818, 1

</llo_original>
